<compile_context>
chip_gen: v7x
topology: tpu7x:2x2x1
jax: 0.10.0
libtpu: 0.0.40
codegen_flags: <defaults>
</compile_context>

<pallas_src>
import jax
import jax.numpy as jnp
from jax.experimental import pallas as pl
from jax.experimental.pallas import tpu as pltpu  # noqa: F401  (TPU backend)


def addmm_kernel(bias_ref, a_ref, w_ref, o_ref):
    # One MXU pass on the (internally padded) sub-tile operands, f32
    # accumulate, row-broadcast bias add on the VPU, single store.
    acc = jnp.dot(a_ref[...], w_ref[...], preferred_element_type=jnp.float32)
    o_ref[...] = bias_ref[...] + acc


def addmm_pallas(bias, a, w):
    """bias: (1, N), a: (M, K), w: (K, N) -> (M, N), all float32.

    Full-extent BlockSpecs: no wrapper-side padding or slicing.  Mosaic pads
    the sub-(8,128) operands inside VMEM for free.
    """
    M, K = a.shape
    Kw, N = w.shape
    assert K == Kw and bias.shape == (1, N)

    flops = 2 * M * K * N
    bytes_accessed = 4 * (M * K + K * N + N + M * N)

    return pl.pallas_call(
        addmm_kernel,
        out_shape=jax.ShapeDtypeStruct((M, N), jnp.float32),
        in_specs=[
            pl.BlockSpec((1, N), lambda: (0, 0)),   # bias, full extent
            pl.BlockSpec((M, K), lambda: (0, 0)),   # a, full extent
            pl.BlockSpec((K, N), lambda: (0, 0)),   # w, full extent
        ],
        out_specs=pl.BlockSpec((M, N), lambda: (0, 0)),
        cost_estimate=pl.CostEstimate(
            flops=flops, transcendentals=0, bytes_accessed=bytes_accessed),
    )(bias, a, w)


def model_forward(x1, x2, w):
    # v1 = addmm(x1, x2, w)  ->  x1 (broadcast bias) + x2 @ w
    v1 = addmm_pallas(x1, x2, w)
    # v2 = torch.cat([v1], dim=-1) is the identity -> return v1 directly.
    return v1


if __name__ == "__main__":
    key = jax.random.PRNGKey(0)
    k1, k2, k3 = jax.random.split(key, 3)

    # Shapes consistent with a well-formed addmm:
    #   x2 (6, 10) @ w (10, 6) -> (6, 6), x1 bias broadcast as (1, 6).
    x1 = jax.random.normal(k1, (1, 6), dtype=jnp.float32)
    x2 = jax.random.normal(k2, (6, 10), dtype=jnp.float32)
    w = jax.random.uniform(k3, (10, 6), dtype=jnp.float32)

    out = model_forward(x1, x2, w)
    out = jax.block_until_ready(out)

    # Reference check in plain JAX.
    ref = x1 + x2 @ w
    assert out.shape == (6, 6)
    assert jnp.allclose(out, ref, atol=1e-5, rtol=1e-5)

    print("KERNEL_OK")
</pallas_src>

<mosaic_0001>
module attributes {stable_mosaic.version = 11 : i64} {
  func.func @addmm_kernel(%arg0: memref<1x6xf32, #tpu.memory_space<vmem>>, %arg1: memref<6x10xf32, #tpu.memory_space<vmem>>, %arg2: memref<10x6xf32, #tpu.memory_space<vmem>>, %arg3: memref<6x6xf32, #tpu.memory_space<vmem>>) attributes {dimension_semantics = [], scalar_prefetch = 0 : i64, scratch_operands = 0 : i64, tpu.core_type = #tpu.core_type<tc>} {
    %c0 = arith.constant 0 : index
    %c0_0 = arith.constant 0 : index
    %0 = vector.load %arg1[%c0, %c0_0] : memref<6x10xf32, #tpu.memory_space<vmem>>, vector<6x10xf32>
    %c0_1 = arith.constant 0 : index
    %c0_2 = arith.constant 0 : index
    %1 = vector.load %arg2[%c0_1, %c0_2] : memref<10x6xf32, #tpu.memory_space<vmem>>, vector<10x6xf32>
    %cst = arith.constant dense<0.000000e+00> : vector<6x6xf32>
    %2 = tpu.matmul %0, %1, %cst {dimension_numbers = #tpu.dot_dimension_numbers<[1], [0], [0], [1], [0, 0, 1, 1], [], []>} : vector<6x10xf32>, vector<10x6xf32>, vector<6x6xf32> -> vector<6x6xf32>
    %c0_3 = arith.constant 0 : index
    %c0_4 = arith.constant 0 : index
    %3 = vector.load %arg0[%c0_3, %c0_4] : memref<1x6xf32, #tpu.memory_space<vmem>>, vector<1x6xf32>
    %4 = vector.broadcast %3 : vector<1x6xf32> to vector<6x6xf32>
    %5 = arith.addf %4, %2 : vector<6x6xf32>
    %c0_5 = arith.constant 0 : index
    %c0_6 = arith.constant 0 : index
    %6 = vector.load %arg3[%c0_5, %c0_6] : memref<6x6xf32, #tpu.memory_space<vmem>>, vector<6x6xf32>
    tpu.vector_store %arg3[%c0_5, %c0_6], %5 {strides = array<i32>} : memref<6x6xf32, #tpu.memory_space<vmem>>, vector<6x6xf32>,
    return
  }
}

</mosaic_0001>

<llo_original>
// kernel: tpu_custom_call.1
$region0: #{tpu_custom_call.1}
  #allocation0 [shape = 'u32[]', space=smem, size = 0x4, offset = 0x4, fixed_abs, tag = 'smem constant byte address 0x4 - core index']
  #allocation1 [shape = 'u32[144,128]{1,0:T(1,128)}', space=vmem, size = 0x12000, scoped, tag = 'internal scratch']
  %s0 = inlined_call_operand.vmem [shape: f32[1,6], index: 0, kind: input, shape index: {}]
  %s1 = inlined_call_operand.vmem [shape: f32[6,10], index: 1, kind: input, shape index: {}]
  %s2 = inlined_call_operand.vmem [shape: f32[10,6], index: 2, kind: input, shape index: {}]
  %s3 = inlined_call_operand.hbm [shape: f32[6,6], index: 3, kind: output, shape index: {}]
  %s4 = sld [smem:[#allocation0]]
  $region22: #{tpu_custom_call.1} parent=0
    _
  %s6 = ssub.s32 1, %s4
  %s7 = scalar_select 0, %s6, %s4
  $region1: #{tpu_custom_call.1} parent=0
    #allocation2 [shape = 'u8[4096]{0}', space=vmem, size = 0x1000, scoped, tag = 'output window, operand 0, single buffered']
    #allocation3 [shape = 's32[1]{0}', space=sflag, size = 0x4, scoped, tag = 'scoped memory for tpu_custom_call.1']
    %8 = vsyncpa [#allocation3], 0
    // Predicated region
    $region2: #{tpu_custom_call.1} parent=1 // pred_check
      _
    $region3: #{tpu_custom_call.1} parent=1 // pred_check_branch
      %10 = sbr.rel (0) target = $region5
    $region4: #{tpu_custom_call.1} parent=1 // pred_region
      _
    $region5: #{tpu_custom_call.1} parent=1 // pred_fallthru
      _
    // Predicated region
    $region6: #{tpu_custom_call.1} parent=1 // pred_check
      _
    $region7: #{tpu_custom_call.1} parent=1 // pred_check_branch
      %12 = sbr.rel (0) target = $region9
    $region8: #{tpu_custom_call.1} parent=1 // pred_region
      _
    $region9: #{tpu_custom_call.1} parent=1 // pred_fallthru
      _
    // Predicated region
    $region10: #{tpu_custom_call.1} parent=1 // pred_check
      _
    $region11: #{tpu_custom_call.1} parent=1 // pred_check_branch
      %14 = sbr.rel (0) target = $region13
    $region12: #{tpu_custom_call.1} parent=1 // pred_region
      _
    $region13: #{tpu_custom_call.1} parent=1 // pred_fallthru
      _
    %v15 = vld [vmem:[%s1] sm:$0x3f]
    %v16 = vld [vmem:[%s2] sm:$0xff]
    %v17 = vld [vmem:[%s2 + $0x8] sm:$0x3]
    %vm18 = vcmask 80896
    %v20 = vsel %vm18, %v15, 0
    %vm22 = vcmask 1041408
    %v24 = vsel %vm22, %v17, 0
    %26 = vmatprep.subr.mxu0 0.0
    %27 = vmatpush1.msra.mxu0 %v16
    %28 = vmatprep.subr.mxu0 0.0
    %29 = vmatpush1.msra.mxu0 %v24
    %30 = vmatprep.subr.mxu0 0.0
    %31 = vmatpush1.msra.mxu0 0.0
    %32 = vmatprep.subr.mxu0 0.0
    %33 = vmatpush1.msra.mxu0 0.0
    %34 = vmatprep.subr.mxu0 0.0
    %35 = vmatpush1.msra.mxu0 0.0
    %36 = vmatprep.subr.mxu0 0.0
    %37 = vmatpush1.msra.mxu0 0.0
    %38 = vmatprep.subr.mxu0 0.0
    %39 = vmatpush1.msra.mxu0 0.0
    %40 = vmatprep.subr.mxu0 0.0
    %41 = vmatpush1.msra.mxu0 0.0
    %42 = vmatprep.subr.mxu0 0.0
    %43 = vmatpush1.msra.mxu0 0.0
    %44 = vmatprep.subr.mxu0 0.0
    %45 = vmatpush1.msra.mxu0 0.0
    %46 = vmatprep.subr.mxu0 0.0
    %47 = vmatpush1.msra.mxu0 0.0
    %48 = vmatprep.subr.mxu0 0.0
    %49 = vmatpush1.msra.mxu0 0.0
    %50 = vmatprep.subr.mxu0 0.0
    %51 = vmatpush1.msra.mxu0 0.0
    %52 = vmatprep.subr.mxu0 0.0
    %53 = vmatpush1.msra.mxu0 0.0
    %54 = vmatprep.subr.mxu0 0.0
    %55 = vmatpush1.msra.mxu0 0.0
    %56 = vmatprep.subr.mxu0 0.0
    %57 = vmatpush1.msra.mxu0 0.0
    %58 = vmatprep.subr.mxu0 0.0
    %59 = vmatpush1.msra.mxu0 0.0
    %60 = vmatprep.subr.mxu0 0.0
    %61 = vmatpush1.msra.mxu0 0.0
    %62 = vmatprep.subr.mxu0 0.0
    %63 = vmatpush1.msra.mxu0 0.0
    %64 = vmatprep.subr.mxu0 0.0
    %65 = vmatpush1.msra.mxu0 0.0
    %66 = vmatprep.subr.mxu0 0.0
    %67 = vmatpush1.msra.mxu0 0.0
    %68 = vmatprep.subr.mxu0 0.0
    %69 = vmatpush1.msra.mxu0 0.0
    %70 = vmatprep.subr.mxu0 0.0
    %71 = vmatpush1.msra.mxu0 0.0
    %72 = vmatprep.subr.mxu0 0.0
    %73 = vmatpush1.msra.mxu0 0.0
    %74 = vmatprep.subr.mxu0 0.0
    %75 = vmatpush1.msra.mxu0 0.0
    %76 = vmatprep.subr.mxu0 0.0
    %77 = vmatpush1.msra.mxu0 0.0
    %78 = vmatprep.subr.mxu0 0.0
    %79 = vmatpush1.msra.mxu0 0.0
    %80 = vmatprep.subr.mxu0 0.0
    %81 = vmatpush1.msra.mxu0 0.0
    %82 = vmatprep.subr.mxu0 0.0
    %83 = vmatpush1.msra.mxu0 0.0
    %84 = vmatprep.subr.mxu0 0.0
    %85 = vmatpush1.msra.mxu0 0.0
    %86 = vmatprep.subr.mxu0 0.0
    %87 = vmatpush1.msra.mxu0 0.0
    %88 = vmatprep.subr.mxu0 0.0
    %89 = vmatpush1.msra.mxu0 0.0
    %90 = vmatprep.mubr.f32.mxu0 0.0
    %91 = vmatmul.mubr.f32.gmra.mrb[0].mxu0 %v20
    %v92 = vpop.f32.mrb[0].mxu0
    %v93 = vadd.f32 0.0, %v92
    %v94 = vpop.f32.mrb[0].mxu0
    %95 = vdwg.mxu0
    %v96 = vld [vmem:[%s0] sm:$0x1]
    %v98 = vlaneseq
    %v99 = vshrl.u32 %v98, 7
    %v100 = vsub.s32 0, %v99
    %v101 = vrot.slane %v96, %v100
    %v103 = vadd.f32 %v101, %v93
    %vm104 = vcmask 46080
    %105 = vst.msk [vmem:[#allocation2] sm:$0x3f] %vm104, %v103
    // Predicated region
    $region14: #{tpu_custom_call.1} parent=1 // pred_check
      _
    $region15: #{tpu_custom_call.1} parent=1 // pred_check_branch
      %107 = sbr.rel (0) target = $region17
    $region16: #{tpu_custom_call.1} parent=1 // pred_region
      %s109 = ssub.s32 128, 128
      %110 = vsyncadd [#allocation3], %s109
      %s112 = sshll.u32 [#allocation2], 4
      %s113 = int_to_ptr.vmem [resolvable:$true] %s112
      %115 = dma.vmem_to_hbm [thread:$0]  %s113, 128, %s3, [#allocation3]
    $region17: #{tpu_custom_call.1} parent=1 // pred_fallthru
      _
    // Predicated region
    $region18: #{tpu_custom_call.1} parent=1 // pred_check
      _
    $region19: #{tpu_custom_call.1} parent=1 // pred_check_branch
      %117 = sbr.rel (0) target = $region21
    $region20: #{tpu_custom_call.1} parent=1 // pred_region
      %118 = dma.done [#allocation3], 128
    $region21: #{tpu_custom_call.1} parent=1 // pred_fallthru
      _
    %119 = vsyncpa [#allocation3], 1

</llo_original>
